<compile_context>
chip_gen: v6e
topology: v6e:2x2x1
jax: 0.10.0
libtpu: 0.0.40
codegen_flags: <defaults>
</compile_context>

<pallas_src>
import functools

import jax
import jax.numpy as jnp
from jax import lax
from jax.experimental import pallas as pl
from jax.experimental.pallas import tpu as pltpu

_NEG_BIG = -1e30   # sentinel; exp() underflows to 0.0, below any real logit


def _drsl2_kernel(pred_ref, labels_ref, out_ref,
                  ce_acc, m_acc, s_acc, xsum_acc,
                  *, top_n, n_total, block_rows, steps_per_chunk,
                  labels_resident):
    chunk = pl.program_id(0)
    i = pl.program_id(1)
    last = pl.num_programs(1) - 1

    @pl.when(i == 0)
    def _init():
        ce_acc[...] = jnp.zeros_like(ce_acc)
        s_acc[...] = jnp.zeros_like(s_acc)
        xsum_acc[...] = jnp.zeros_like(xsum_acc)
        m_acc[...] = jnp.full_like(m_acc, _NEG_BIG)

    work = pred_ref[...]                       # (TN, C) native dtype (f32/bf16)
    pred = work.astype(jnp.float32)            # f32 only for exp/log/accum
    tn, c = work.shape

    # Logical first row of this tile (un-clamped; padded steps mask to empty).
    row0 = (chunk * steps_per_chunk + i) * block_rows
    row = row0 + lax.broadcasted_iota(jnp.int32, (tn, 1), 0)
    valid = row < n_total                      # (TN, 1) bool

    if labels_resident:
        start = pl.multiple_of(row0, 8)
        labels = labels_ref[pl.ds(start, tn), :]     # slice of resident buffer
    else:
        labels = labels_ref[...]                     # per-tile (TN, 1) block

    col = lax.broadcasted_iota(jnp.int32, (tn, c), 1)
    onehot = col == labels                     # (TN, C) bool

    # ---- cross entropy partial sum (XLU/VPU lane reductions, no MXU) --------
    row_max = jnp.max(pred, axis=1, keepdims=True)
    sum_exp = jnp.sum(jnp.exp(pred - row_max), axis=1, keepdims=True)
    pred_label = jnp.sum(jnp.where(onehot, pred, 0.0), axis=1, keepdims=True)
    lse = jnp.log(sum_exp) + row_max
    ce_tile = jnp.sum(jnp.where(valid, lse - pred_label, 0.0),
                      axis=0, keepdims=True)                     # (1, 1)

    # ---- sum of the top_n largest NON-label logits per row ------------------
    # Multiset top-k identical to torch.sort: take every occurrence of the
    # running max (clamped by `remaining`).  Compare/select in the native
    # dtype (bf16 VALUs on v6e/v7x); narrow (TN,1) bookkeeping in f32.
    cur = jnp.where(onehot, _NEG_BIG, work)
    remaining = jnp.full((tn, 1), float(top_n), jnp.float32)
    top_sum = jnp.zeros((tn, 1), jnp.float32)
    largest = None
    for k in range(top_n):
        m = jnp.max(cur, axis=1, keepdims=True)                  # XLU max
        m32 = m.astype(jnp.float32)
        if k == 0:
            largest = m32
        is_m = cur == m
        cnt = jnp.sum(is_m.astype(jnp.float32), axis=1, keepdims=True)
        take = jnp.minimum(cnt, remaining)
        top_sum = top_sum + take * m32
        if k < top_n - 1:                      # last-iteration updates are dead
            remaining = remaining - take
            cur = jnp.where(is_m, _NEG_BIG, cur)
    # Reference drops the single largest, averages the remaining top_n-1.
    x_mean = (top_sum - largest) * (1.0 / float(top_n - 1))      # (TN, 1) f32
    x_mean = jnp.where(valid, x_mean, _NEG_BIG)                  # mask padding

    # ---- streaming (online) logsumexp over the batch axis -------------------
    m_old = m_acc[...]                                           # (1, 1)
    tile_max = jnp.max(x_mean, axis=0, keepdims=True)
    m_new = jnp.maximum(m_old, tile_max)
    s_acc[...] = (s_acc[...] * jnp.exp(m_old - m_new)
                  + jnp.sum(jnp.exp(x_mean - m_new), axis=0, keepdims=True))
    m_acc[...] = m_new
    xsum_acc[...] += jnp.sum(jnp.where(valid, x_mean, 0.0), axis=0, keepdims=True)
    ce_acc[...] += ce_tile

    # ---- emit this chunk's partials (merged in the JAX wrapper) --------------
    @pl.when(i == last)
    def _finalize():
        sub = lax.broadcasted_iota(jnp.int32, (8, 128), 0)
        lane = lax.broadcasted_iota(jnp.int32, (8, 128), 1)
        r0 = sub == 0
        tile = jnp.zeros((8, 128), jnp.float32)
        tile = jnp.where(r0 & (lane == 0),
                         jnp.broadcast_to(ce_acc[...], (8, 128)), tile)
        tile = jnp.where(r0 & (lane == 1),
                         jnp.broadcast_to(m_acc[...], (8, 128)), tile)
        tile = jnp.where(r0 & (lane == 2),
                         jnp.broadcast_to(s_acc[...], (8, 128)), tile)
        tile = jnp.where(r0 & (lane == 3),
                         jnp.broadcast_to(xsum_acc[...], (8, 128)), tile)
        out_ref[...] = tile


def _vmem_capacity_bytes():
    try:
        info = pltpu.get_tpu_info()
        cap = getattr(info, "vmem_capacity_bytes", None)
        if isinstance(cap, int) and cap > 0:
            return cap
    except Exception:
        pass
    return 64 * 1024 * 1024            # conservative default (v7x-sized VMEM)


def _plan_tiling(n, c):
    cap = _vmem_capacity_bytes()
    if cap >= 128 * 1024 * 1024:       # v5e / v6e: 128 MiB VMEM
        tile_budget = 8 << 20          # bytes of one (TN, C) f32 working tile
        vmem_limit = 96 << 20
    else:                              # v7x: 64 MiB VMEM per TensorCore
        tile_budget = 4 << 20
        vmem_limit = 48 << 20
    rows = tile_budget // (4 * c)
    rows = max(8, min(32768, (rows // 8) * 8))
    block_rows = n if n <= rows else rows
    return block_rows, vmem_limit
    # TODO(synk): for very large C (many thousands of classes) also tile the
    # class/lane axis and merge per-chunk top-k candidates; not needed here.


def drsl2_loss(pred, labels, *, a=1.0, b=0.001, top_n=4, block_rows=None):
    """pred: (N, C) float32/bfloat16 logits, labels: (N,) int. Scalar loss."""
    n, c = pred.shape
    top_n = int(top_n)
    if top_n < 2:
        raise ValueError("top_n must be >= 2 (reference averages top_n-1 values)")
    if c - 1 < top_n:
        raise ValueError("need at least top_n non-label classes")

    auto_rows, vmem_limit = _plan_tiling(n, c)
    if block_rows is None:
        block_rows = auto_rows
    block_rows = min(int(block_rows), n)
    if block_rows != n:
        assert block_rows % 8 == 0, "batch tile must be a multiple of 8"

    total_steps = pl.cdiv(n, block_rows)
    # Leading "parallel" axis of 2 chunks feeds both TensorCores on v7x
    # (megacore); on single-core chips it simply runs sequentially.
    num_chunks = 2 if total_steps >= 2 else 1
    steps_per_chunk = pl.cdiv(total_steps, num_chunks)
    n_padded = num_chunks * steps_per_chunk * block_rows
    last_block = total_steps - 1

    labels2d = labels.astype(jnp.int32).reshape(n, 1)
    if n_padded > n:
        labels2d = jnp.pad(labels2d, ((0, n_padded - n), (0, 0)))

    # Keep labels resident in VMEM (one DMA total) when small; otherwise
    # stream a (block_rows, 1) block per step.
    labels_resident = n_padded * 4 <= 512 * 1024
    if labels_resident:
        labels_spec = pl.BlockSpec((n_padded, 1), lambda ci, i: (0, 0))
    else:
        labels_spec = pl.BlockSpec(
            (block_rows, 1), lambda ci, i: (ci * steps_per_chunk + i, 0))

    # Clamp the logits block index so padded trailing steps of the last chunk
    # never issue a fully out-of-bounds DMA (their rows are masked anyway).
    pred_spec = pl.BlockSpec(
        (block_rows, c),
        lambda ci, i: (jnp.minimum(ci * steps_per_chunk + i, last_block), 0))

    kernel = functools.partial(
        _drsl2_kernel, top_n=top_n, n_total=int(n), block_rows=int(block_rows),
        steps_per_chunk=int(steps_per_chunk), labels_resident=labels_resident)

    partials = pl.pallas_call(
        kernel,
        out_shape=jax.ShapeDtypeStruct((num_chunks * 8, 128), jnp.float32),
        grid_spec=pltpu.PrefetchScalarGridSpec(
            num_scalar_prefetch=0,
            grid=(num_chunks, steps_per_chunk),
            in_specs=[pred_spec, labels_spec],
            out_specs=pl.BlockSpec((8, 128), lambda ci, i: (ci, 0)),
            scratch_shapes=[
                pltpu.VMEM((1, 1), jnp.float32),   # ce partial sum
                pltpu.VMEM((1, 1), jnp.float32),   # running max   (online LSE)
                pltpu.VMEM((1, 1), jnp.float32),   # running e-sum (online LSE)
                pltpu.VMEM((1, 1), jnp.float32),   # sum of x_mean
            ]),
        compiler_params=pltpu.CompilerParams(
            dimension_semantics=("parallel", "arbitrary"),
            vmem_limit_bytes=vmem_limit),
        cost_estimate=pl.CostEstimate(
            flops=int(n * c * (6 + 3 * top_n)),
            transcendentals=int(n * c + 4 * n),
            bytes_accessed=int(n * c * pred.dtype.itemsize + n_padded * 4
                               + num_chunks * 8 * 128 * 4)),
    )(pred, labels2d)

    # Merge per-chunk partials: plain sums + two-way online logsumexp.
    parts = partials.reshape(num_chunks, 8, 128)[:, 0, :4]      # (chunks, 4)
    ce_sum, m_c, s_c, xsum = parts[:, 0], parts[:, 1], parts[:, 2], parts[:, 3]
    m_glob = jnp.max(m_c)
    s_glob = jnp.sum(s_c * jnp.exp(m_c - m_glob))
    ce = jnp.sum(ce_sum) / n
    x = n * (m_glob + jnp.log(s_glob)) - jnp.sum(xsum)
    return a * ce + b * x


def _drsl2_ref(pred, labels, *, a=1.0, b=0.001, top_n=4):
    """Plain-JAX reference mirroring the PyTorch module."""
    n, c = pred.shape
    predf = pred.astype(jnp.float32)
    logp = jax.nn.log_softmax(predf, axis=1)
    ce = -jnp.mean(logp[jnp.arange(n), labels])
    onehot = labels[:, None] == jnp.arange(c)[None, :]
    masked = jnp.where(onehot, -jnp.inf, predf)     # push label entry to bottom
    srt = jnp.sort(masked, axis=1)
    x_mean = srt[:, -top_n:-1].mean(axis=1, keepdims=True)
    x = -jax.nn.log_softmax(x_mean, axis=0).sum()
    return a * ce + b * x


if __name__ == "__main__":
    key = jax.random.PRNGKey(0)
    k1, k2, k3, k4 = jax.random.split(key, 4)

    # Case 1: batch=8, classes=16 — single-tile, single-chunk path.
    n1, c1 = 8, 16
    pred1 = jax.random.normal(k1, (n1, c1), dtype=jnp.float32)
    labels1 = jax.random.randint(k2, (n1,), 0, c1, dtype=jnp.int32)
    loss1 = drsl2_loss(pred1, labels1, a=1.0, b=0.001, top_n=4)
    jax.block_until_ready(loss1)
    ref1 = _drsl2_ref(pred1, labels1, a=1.0, b=0.001, top_n=4)
    assert jnp.allclose(loss1, ref1, rtol=1e-4, atol=1e-4), (loss1, ref1)

    # Case 2: batch=20, 8-row tiles — 2 parallel chunks, masked/padded tail.
    n2, c2 = 20, 16
    pred2 = jax.random.normal(k3, (n2, c2), dtype=jnp.float32)
    labels2 = jax.random.randint(k4, (n2,), 0, c2, dtype=jnp.int32)
    loss2 = drsl2_loss(pred2, labels2, a=1.0, b=0.001, top_n=4, block_rows=8)
    jax.block_until_ready(loss2)
    ref2 = _drsl2_ref(pred2, labels2, a=1.0, b=0.001, top_n=4)
    assert jnp.allclose(loss2, ref2, rtol=1e-4, atol=1e-4), (loss2, ref2)

    # Case 3: bf16 logits — native-dtype top-k path, f32 exp/accumulation.
    pred3 = pred2.astype(jnp.bfloat16)
    loss3 = drsl2_loss(pred3, labels2, a=1.0, b=0.001, top_n=4, block_rows=8)
    jax.block_until_ready(loss3)
    ref3 = _drsl2_ref(pred3, labels2, a=1.0, b=0.001, top_n=4)
    assert jnp.allclose(loss3, ref3, rtol=1e-3, atol=1e-3), (loss3, ref3)

    print("KERNEL_OK")
</pallas_src>

<mosaic_0001>
module attributes {stable_mosaic.version = 11 : i64} {
  func.func @_drsl2_kernel(%arg0: i32, %arg1: i32, %arg2: memref<8x16xf32, #tpu.memory_space<vmem>>, %arg3: memref<8x1xi32, #tpu.memory_space<vmem>>, %arg4: memref<8x128xf32, #tpu.memory_space<vmem>>, %arg5: memref<1x1xf32, #tpu.memory_space<vmem>>, %arg6: memref<1x1xf32, #tpu.memory_space<vmem>>, %arg7: memref<1x1xf32, #tpu.memory_space<vmem>>, %arg8: memref<1x1xf32, #tpu.memory_space<vmem>>) attributes {dimension_semantics = [#tpu.dimension_semantics<parallel>, #tpu.dimension_semantics<arbitrary>], iteration_bounds = array<i64: 1, 1>, scalar_prefetch = 0 : i64, scratch_operands = 4 : i64, tpu.core_type = #tpu.core_type<tc>, window_params = [{transform_indices = @transform_0, window_bounds = array<i64: 8, 16>}, {pipeline_mode = #tpu.pipeline_mode<synchronous>, transform_indices = @transform_1, window_bounds = array<i64: 8, 1>}, {transform_indices = @transform_2, window_bounds = array<i64: 8, 128>}]} {
    %c0_i32 = arith.constant 0 : i32
    %0 = arith.cmpi eq, %arg1, %c0_i32 : i32
    %1 = arith.extui %0 : i1 to i32
    %c0_i32_0 = arith.constant 0 : i32
    %2 = arith.cmpi ne, %1, %c0_i32_0 : i32
    scf.if %2 {
      %cst_47 = arith.constant 0.000000e+00 : f32
      %127 = vector.broadcast %cst_47 : f32 to vector<1x1xf32>
      %c0_48 = arith.constant 0 : index
      %c0_49 = arith.constant 0 : index
      %128 = vector.load %arg5[%c0_48, %c0_49] : memref<1x1xf32, #tpu.memory_space<vmem>>, vector<1x1xf32>
      tpu.vector_store %arg5[%c0_48, %c0_49], %127 {strides = array<i32>} : memref<1x1xf32, #tpu.memory_space<vmem>>, vector<1x1xf32>,
      %cst_50 = arith.constant 0.000000e+00 : f32
      %129 = vector.broadcast %cst_50 : f32 to vector<1x1xf32>
      %c0_51 = arith.constant 0 : index
      %c0_52 = arith.constant 0 : index
      %130 = vector.load %arg7[%c0_51, %c0_52] : memref<1x1xf32, #tpu.memory_space<vmem>>, vector<1x1xf32>
      tpu.vector_store %arg7[%c0_51, %c0_52], %129 {strides = array<i32>} : memref<1x1xf32, #tpu.memory_space<vmem>>, vector<1x1xf32>,
      %cst_53 = arith.constant 0.000000e+00 : f32
      %131 = vector.broadcast %cst_53 : f32 to vector<1x1xf32>
      %c0_54 = arith.constant 0 : index
      %c0_55 = arith.constant 0 : index
      %132 = vector.load %arg8[%c0_54, %c0_55] : memref<1x1xf32, #tpu.memory_space<vmem>>, vector<1x1xf32>
      tpu.vector_store %arg8[%c0_54, %c0_55], %131 {strides = array<i32>} : memref<1x1xf32, #tpu.memory_space<vmem>>, vector<1x1xf32>,
      %cst_56 = arith.constant -1.000000e+30 : f32
      %133 = vector.broadcast %cst_56 : f32 to vector<1x1xf32>
      %c0_57 = arith.constant 0 : index
      %c0_58 = arith.constant 0 : index
      %134 = vector.load %arg6[%c0_57, %c0_58] : memref<1x1xf32, #tpu.memory_space<vmem>>, vector<1x1xf32>
      tpu.vector_store %arg6[%c0_57, %c0_58], %133 {strides = array<i32>} : memref<1x1xf32, #tpu.memory_space<vmem>>, vector<1x1xf32>,
    } else {
    }
    %c0 = arith.constant 0 : index
    %c0_1 = arith.constant 0 : index
    %3 = vector.load %arg2[%c0, %c0_1] : memref<8x16xf32, #tpu.memory_space<vmem>>, vector<8x16xf32>
    %c1_i32 = arith.constant 1 : i32
    %4 = arith.muli %arg0, %c1_i32 : i32
    %5 = arith.addi %4, %arg1 : i32
    %c8_i32 = arith.constant 8 : i32
    %6 = arith.muli %5, %c8_i32 : i32
    %7 = tpu.iota {dimensions = array<i32: 0>} : vector<8x1xi32>
    %8 = vector.broadcast %6 : i32 to vector<8x1xi32>
    %9 = arith.addi %8, %7 : vector<8x1xi32>
    %c8_i32_2 = arith.constant 8 : i32
    %10 = vector.broadcast %c8_i32_2 : i32 to vector<8x1xi32>
    %11 = arith.cmpi slt, %9, %10 : vector<8x1xi32>
    %12 = tpu.assume_multiple %6, 8 : i32
    %13 = arith.index_cast %12 : i32 to index
    %c0_3 = arith.constant 0 : index
    %14 = vector.load %arg3[%13, %c0_3] : memref<8x1xi32, #tpu.memory_space<vmem>>, vector<8x1xi32>
    %15 = tpu.iota {dimensions = array<i32: 1>} : vector<8x16xi32>
    %16 = vector.broadcast %14 : vector<8x1xi32> to vector<8x16xi32>
    %17 = arith.cmpi eq, %15, %16 : vector<8x16xi32>
    %cst = arith.constant dense<0xFF800000> : vector<8xf32>
    %18 = vector.multi_reduction <maximumf>, %3, %cst [1] : vector<8x16xf32> to vector<8xf32>
    %19 = vector.shape_cast %18 : vector<8xf32> to vector<8x1xf32>
    %20 = vector.broadcast %19 : vector<8x1xf32> to vector<8x16xf32>
    %21 = arith.subf %3, %20 : vector<8x16xf32>
    %22 = math.exp %21 : vector<8x16xf32>
    %cst_4 = arith.constant dense<0.000000e+00> : vector<8xf32>
    %23 = vector.multi_reduction <add>, %22, %cst_4 [1] : vector<8x16xf32> to vector<8xf32>
    %24 = vector.shape_cast %23 : vector<8xf32> to vector<8x1xf32>
    %cst_5 = arith.constant 0.000000e+00 : f32
    %25 = vector.broadcast %cst_5 : f32 to vector<8x16xf32>
    %26 = arith.select %17, %3, %25 : vector<8x16xi1>, vector<8x16xf32>
    %cst_6 = arith.constant dense<0.000000e+00> : vector<8xf32>
    %27 = vector.multi_reduction <add>, %26, %cst_6 [1] : vector<8x16xf32> to vector<8xf32>
    %28 = vector.shape_cast %27 : vector<8xf32> to vector<8x1xf32>
    %29 = math.log %24 : vector<8x1xf32>
    %30 = arith.addf %29, %19 : vector<8x1xf32>
    %31 = arith.subf %30, %28 : vector<8x1xf32>
    %cst_7 = arith.constant 0.000000e+00 : f32
    %32 = vector.broadcast %cst_7 : f32 to vector<8x1xf32>
    %33 = arith.select %11, %31, %32 : vector<8x1xi1>, vector<8x1xf32>
    %cst_8 = arith.constant dense<0.000000e+00> : vector<1xf32>
    %34 = vector.multi_reduction <add>, %33, %cst_8 [0] : vector<8x1xf32> to vector<1xf32>
    %35 = vector.shape_cast %34 : vector<1xf32> to vector<1x1xf32>
    %cst_9 = arith.constant -1.000000e+30 : f32
    %36 = vector.broadcast %cst_9 : f32 to vector<8x16xf32>
    %37 = arith.select %17, %36, %3 : vector<8x16xi1>, vector<8x16xf32>
    %cst_10 = arith.constant 4.000000e+00 : f32
    %38 = vector.broadcast %cst_10 : f32 to vector<8x1xf32>
    %cst_11 = arith.constant 0.000000e+00 : f32
    %39 = vector.broadcast %cst_11 : f32 to vector<8x1xf32>
    %cst_12 = arith.constant dense<0xFF800000> : vector<8xf32>
    %40 = vector.multi_reduction <maximumf>, %37, %cst_12 [1] : vector<8x16xf32> to vector<8xf32>
    %41 = vector.shape_cast %40 : vector<8xf32> to vector<8x1xf32>
    %42 = vector.broadcast %41 : vector<8x1xf32> to vector<8x16xf32>
    %43 = arith.cmpf oeq, %37, %42 : vector<8x16xf32>
    %44 = arith.extui %43 : vector<8x16xi1> to vector<8x16xi32>
    %45 = arith.sitofp %44 : vector<8x16xi32> to vector<8x16xf32>
    %cst_13 = arith.constant dense<0.000000e+00> : vector<8xf32>
    %46 = vector.multi_reduction <add>, %45, %cst_13 [1] : vector<8x16xf32> to vector<8xf32>
    %47 = vector.shape_cast %46 : vector<8xf32> to vector<8x1xf32>
    %48 = arith.minimumf %47, %38 : vector<8x1xf32>
    %49 = arith.mulf %48, %41 : vector<8x1xf32>
    %50 = arith.addf %39, %49 : vector<8x1xf32>
    %51 = arith.subf %38, %48 : vector<8x1xf32>
    %cst_14 = arith.constant -1.000000e+30 : f32
    %52 = vector.broadcast %cst_14 : f32 to vector<8x16xf32>
    %53 = arith.select %43, %52, %37 : vector<8x16xi1>, vector<8x16xf32>
    %cst_15 = arith.constant dense<0xFF800000> : vector<8xf32>
    %54 = vector.multi_reduction <maximumf>, %53, %cst_15 [1] : vector<8x16xf32> to vector<8xf32>
    %55 = vector.shape_cast %54 : vector<8xf32> to vector<8x1xf32>
    %56 = vector.broadcast %55 : vector<8x1xf32> to vector<8x16xf32>
    %57 = arith.cmpf oeq, %53, %56 : vector<8x16xf32>
    %58 = arith.extui %57 : vector<8x16xi1> to vector<8x16xi32>
    %59 = arith.sitofp %58 : vector<8x16xi32> to vector<8x16xf32>
    %cst_16 = arith.constant dense<0.000000e+00> : vector<8xf32>
    %60 = vector.multi_reduction <add>, %59, %cst_16 [1] : vector<8x16xf32> to vector<8xf32>
    %61 = vector.shape_cast %60 : vector<8xf32> to vector<8x1xf32>
    %62 = arith.minimumf %61, %51 : vector<8x1xf32>
    %63 = arith.mulf %62, %55 : vector<8x1xf32>
    %64 = arith.addf %50, %63 : vector<8x1xf32>
    %65 = arith.subf %51, %62 : vector<8x1xf32>
    %cst_17 = arith.constant -1.000000e+30 : f32
    %66 = vector.broadcast %cst_17 : f32 to vector<8x16xf32>
    %67 = arith.select %57, %66, %53 : vector<8x16xi1>, vector<8x16xf32>
    %cst_18 = arith.constant dense<0xFF800000> : vector<8xf32>
    %68 = vector.multi_reduction <maximumf>, %67, %cst_18 [1] : vector<8x16xf32> to vector<8xf32>
    %69 = vector.shape_cast %68 : vector<8xf32> to vector<8x1xf32>
    %70 = vector.broadcast %69 : vector<8x1xf32> to vector<8x16xf32>
    %71 = arith.cmpf oeq, %67, %70 : vector<8x16xf32>
    %72 = arith.extui %71 : vector<8x16xi1> to vector<8x16xi32>
    %73 = arith.sitofp %72 : vector<8x16xi32> to vector<8x16xf32>
    %cst_19 = arith.constant dense<0.000000e+00> : vector<8xf32>
    %74 = vector.multi_reduction <add>, %73, %cst_19 [1] : vector<8x16xf32> to vector<8xf32>
    %75 = vector.shape_cast %74 : vector<8xf32> to vector<8x1xf32>
    %76 = arith.minimumf %75, %65 : vector<8x1xf32>
    %77 = arith.mulf %76, %69 : vector<8x1xf32>
    %78 = arith.addf %64, %77 : vector<8x1xf32>
    %79 = arith.subf %65, %76 : vector<8x1xf32>
    %cst_20 = arith.constant -1.000000e+30 : f32
    %80 = vector.broadcast %cst_20 : f32 to vector<8x16xf32>
    %81 = arith.select %71, %80, %67 : vector<8x16xi1>, vector<8x16xf32>
    %cst_21 = arith.constant dense<0xFF800000> : vector<8xf32>
    %82 = vector.multi_reduction <maximumf>, %81, %cst_21 [1] : vector<8x16xf32> to vector<8xf32>
    %83 = vector.shape_cast %82 : vector<8xf32> to vector<8x1xf32>
    %84 = vector.broadcast %83 : vector<8x1xf32> to vector<8x16xf32>
    %85 = arith.cmpf oeq, %81, %84 : vector<8x16xf32>
    %86 = arith.extui %85 : vector<8x16xi1> to vector<8x16xi32>
    %87 = arith.sitofp %86 : vector<8x16xi32> to vector<8x16xf32>
    %cst_22 = arith.constant dense<0.000000e+00> : vector<8xf32>
    %88 = vector.multi_reduction <add>, %87, %cst_22 [1] : vector<8x16xf32> to vector<8xf32>
    %89 = vector.shape_cast %88 : vector<8xf32> to vector<8x1xf32>
    %90 = arith.minimumf %89, %79 : vector<8x1xf32>
    %91 = arith.mulf %90, %83 : vector<8x1xf32>
    %92 = arith.addf %78, %91 : vector<8x1xf32>
    %93 = arith.subf %92, %41 : vector<8x1xf32>
    %cst_23 = arith.constant 0.333333343 : f32
    %94 = vector.broadcast %cst_23 : f32 to vector<8x1xf32>
    %95 = arith.mulf %93, %94 : vector<8x1xf32>
    %cst_24 = arith.constant -1.000000e+30 : f32
    %96 = vector.broadcast %cst_24 : f32 to vector<8x1xf32>
    %97 = arith.select %11, %95, %96 : vector<8x1xi1>, vector<8x1xf32>
    %c0_25 = arith.constant 0 : index
    %c0_26 = arith.constant 0 : index
    %98 = vector.load %arg6[%c0_25, %c0_26] : memref<1x1xf32, #tpu.memory_space<vmem>>, vector<1x1xf32>
    %cst_27 = arith.constant dense<0xFF800000> : vector<1xf32>
    %99 = vector.multi_reduction <maximumf>, %97, %cst_27 [0] : vector<8x1xf32> to vector<1xf32>
    %100 = vector.shape_cast %99 : vector<1xf32> to vector<1x1xf32>
    %101 = arith.maximumf %98, %100 : vector<1x1xf32>
    %c0_28 = arith.constant 0 : index
    %c0_29 = arith.constant 0 : index
    %102 = vector.load %arg7[%c0_28, %c0_29] : memref<1x1xf32, #tpu.memory_space<vmem>>, vector<1x1xf32>
    %103 = arith.subf %98, %101 : vector<1x1xf32>
    %104 = math.exp %103 : vector<1x1xf32>
    %105 = arith.mulf %102, %104 : vector<1x1xf32>
    %106 = vector.broadcast %101 : vector<1x1xf32> to vector<8x1xf32>
    %107 = arith.subf %97, %106 : vector<8x1xf32>
    %108 = math.exp %107 : vector<8x1xf32>
    %cst_30 = arith.constant dense<0.000000e+00> : vector<1xf32>
    %109 = vector.multi_reduction <add>, %108, %cst_30 [0] : vector<8x1xf32> to vector<1xf32>
    %110 = vector.shape_cast %109 : vector<1xf32> to vector<1x1xf32>
    %111 = arith.addf %105, %110 : vector<1x1xf32>
    %c0_31 = arith.constant 0 : index
    %c0_32 = arith.constant 0 : index
    %112 = vector.load %arg7[%c0_31, %c0_32] : memref<1x1xf32, #tpu.memory_space<vmem>>, vector<1x1xf32>
    tpu.vector_store %arg7[%c0_31, %c0_32], %111 {strides = array<i32>} : memref<1x1xf32, #tpu.memory_space<vmem>>, vector<1x1xf32>,
    %c0_33 = arith.constant 0 : index
    %c0_34 = arith.constant 0 : index
    %113 = vector.load %arg6[%c0_33, %c0_34] : memref<1x1xf32, #tpu.memory_space<vmem>>, vector<1x1xf32>
    tpu.vector_store %arg6[%c0_33, %c0_34], %101 {strides = array<i32>} : memref<1x1xf32, #tpu.memory_space<vmem>>, vector<1x1xf32>,
    %c0_35 = arith.constant 0 : index
    %c0_36 = arith.constant 0 : index
    %114 = vector.load %arg8[%c0_35, %c0_36] : memref<1x1xf32, #tpu.memory_space<vmem>>, vector<1x1xf32>
    %cst_37 = arith.constant 0.000000e+00 : f32
    %115 = vector.broadcast %cst_37 : f32 to vector<8x1xf32>
    %116 = arith.select %11, %97, %115 : vector<8x1xi1>, vector<8x1xf32>
    %cst_38 = arith.constant dense<0.000000e+00> : vector<1xf32>
    %117 = vector.multi_reduction <add>, %116, %cst_38 [0] : vector<8x1xf32> to vector<1xf32>
    %118 = vector.shape_cast %117 : vector<1xf32> to vector<1x1xf32>
    %119 = arith.addf %114, %118 : vector<1x1xf32>
    %c0_39 = arith.constant 0 : index
    %c0_40 = arith.constant 0 : index
    %120 = vector.load %arg8[%c0_39, %c0_40] : memref<1x1xf32, #tpu.memory_space<vmem>>, vector<1x1xf32>
    tpu.vector_store %arg8[%c0_39, %c0_40], %119 {strides = array<i32>} : memref<1x1xf32, #tpu.memory_space<vmem>>, vector<1x1xf32>,
    %c0_41 = arith.constant 0 : index
    %c0_42 = arith.constant 0 : index
    %121 = vector.load %arg5[%c0_41, %c0_42] : memref<1x1xf32, #tpu.memory_space<vmem>>, vector<1x1xf32>
    %122 = arith.addf %121, %35 : vector<1x1xf32>
    %c0_43 = arith.constant 0 : index
    %c0_44 = arith.constant 0 : index
    %123 = vector.load %arg5[%c0_43, %c0_44] : memref<1x1xf32, #tpu.memory_space<vmem>>, vector<1x1xf32>
    tpu.vector_store %arg5[%c0_43, %c0_44], %122 {strides = array<i32>} : memref<1x1xf32, #tpu.memory_space<vmem>>, vector<1x1xf32>,
    %c0_i32_45 = arith.constant 0 : i32
    %124 = arith.cmpi eq, %arg1, %c0_i32_45 : i32
    %125 = arith.extui %124 : i1 to i32
    %c0_i32_46 = arith.constant 0 : i32
    %126 = arith.cmpi ne, %125, %c0_i32_46 : i32
    scf.if %126 {
      %127 = tpu.iota {dimensions = array<i32: 0>} : vector<8x128xi32>
      %128 = tpu.iota {dimensions = array<i32: 1>} : vector<8x128xi32>
      %c0_i32_47 = arith.constant 0 : i32
      %129 = vector.broadcast %c0_i32_47 : i32 to vector<8x128xi32>
      %130 = arith.cmpi eq, %127, %129 : vector<8x128xi32>
      %cst_48 = arith.constant 0.000000e+00 : f32
      %131 = vector.broadcast %cst_48 : f32 to vector<8x128xf32>
      %c0_i32_49 = arith.constant 0 : i32
      %132 = vector.broadcast %c0_i32_49 : i32 to vector<8x128xi32>
      %133 = arith.cmpi eq, %128, %132 : vector<8x128xi32>
      %134 = arith.andi %130, %133 : vector<8x128xi1>
      %c0_50 = arith.constant 0 : index
      %c0_51 = arith.constant 0 : index
      %135 = vector.load %arg5[%c0_50, %c0_51] : memref<1x1xf32, #tpu.memory_space<vmem>>, vector<1x1xf32>
      %136 = vector.shape_cast %135 : vector<1x1xf32> to vector<1x1xf32>
      %137 = vector.broadcast %136 : vector<1x1xf32> to vector<8x128xf32>
      %138 = arith.select %134, %137, %131 : vector<8x128xi1>, vector<8x128xf32>
      %c1_i32_52 = arith.constant 1 : i32
      %139 = vector.broadcast %c1_i32_52 : i32 to vector<8x128xi32>
      %140 = arith.cmpi eq, %128, %139 : vector<8x128xi32>
      %141 = arith.andi %130, %140 : vector<8x128xi1>
      %c0_53 = arith.constant 0 : index
      %c0_54 = arith.constant 0 : index
      %142 = vector.load %arg6[%c0_53, %c0_54] : memref<1x1xf32, #tpu.memory_space<vmem>>, vector<1x1xf32>
      %143 = vector.shape_cast %142 : vector<1x1xf32> to vector<1x1xf32>
      %144 = vector.broadcast %143 : vector<1x1xf32> to vector<8x128xf32>
      %145 = arith.select %141, %144, %138 : vector<8x128xi1>, vector<8x128xf32>
      %c2_i32 = arith.constant 2 : i32
      %146 = vector.broadcast %c2_i32 : i32 to vector<8x128xi32>
      %147 = arith.cmpi eq, %128, %146 : vector<8x128xi32>
      %148 = arith.andi %130, %147 : vector<8x128xi1>
      %c0_55 = arith.constant 0 : index
      %c0_56 = arith.constant 0 : index
      %149 = vector.load %arg7[%c0_55, %c0_56] : memref<1x1xf32, #tpu.memory_space<vmem>>, vector<1x1xf32>
      %150 = vector.shape_cast %149 : vector<1x1xf32> to vector<1x1xf32>
      %151 = vector.broadcast %150 : vector<1x1xf32> to vector<8x128xf32>
      %152 = arith.select %148, %151, %145 : vector<8x128xi1>, vector<8x128xf32>
      %c3_i32 = arith.constant 3 : i32
      %153 = vector.broadcast %c3_i32 : i32 to vector<8x128xi32>
      %154 = arith.cmpi eq, %128, %153 : vector<8x128xi32>
      %155 = arith.andi %130, %154 : vector<8x128xi1>
      %c0_57 = arith.constant 0 : index
      %c0_58 = arith.constant 0 : index
      %156 = vector.load %arg8[%c0_57, %c0_58] : memref<1x1xf32, #tpu.memory_space<vmem>>, vector<1x1xf32>
      %157 = vector.shape_cast %156 : vector<1x1xf32> to vector<1x1xf32>
      %158 = vector.broadcast %157 : vector<1x1xf32> to vector<8x128xf32>
      %159 = arith.select %155, %158, %152 : vector<8x128xi1>, vector<8x128xf32>
      %c0_59 = arith.constant 0 : index
      %c0_60 = arith.constant 0 : index
      %160 = vector.load %arg4[%c0_59, %c0_60] : memref<8x128xf32, #tpu.memory_space<vmem>>, vector<8x128xf32>
      tpu.vector_store %arg4[%c0_59, %c0_60], %159 {strides = array<i32>} : memref<8x128xf32, #tpu.memory_space<vmem>>, vector<8x128xf32>,
    } else {
    }
    return
  }
  func.func @transform_0(%arg0: i32, %arg1: i32) -> (i32, i32) {
    %c1_i32 = arith.constant 1 : i32
    %0 = arith.muli %arg0, %c1_i32 : i32
    %1 = arith.addi %0, %arg1 : i32
    %c0_i32 = arith.constant 0 : i32
    %2 = arith.minsi %1, %c0_i32 : i32
    %c0_i32_0 = arith.constant 0 : i32
    %c0_i32_1 = arith.constant 0 : i32
    return %2, %c0_i32_0 : i32, i32
  }
  func.func @transform_1(%arg0: i32, %arg1: i32) -> (i32, i32) {
    %c0_i32 = arith.constant 0 : i32
    %c0_i32_0 = arith.constant 0 : i32
    %c0_i32_1 = arith.constant 0 : i32
    return %c0_i32, %c0_i32_0 : i32, i32
  }
  func.func @transform_2(%arg0: i32, %arg1: i32) -> (i32, i32) {
    %c0_i32 = arith.constant 0 : i32
    %c0_i32_0 = arith.constant 0 : i32
    return %arg0, %c0_i32 : i32, i32
  }
}

</mosaic_0001>

<llo_original>
// kernel: tpu_custom_call.1
$region0: #{tpu_custom_call.1}
  #allocation0 [shape = 'u32[]', space=smem, size = 0x4, offset = 0x4, fixed_abs, tag = 'smem constant byte address 0x4 - core index']
  #allocation1 [shape = 'u32[144,128]{1,0:T(1,128)}', space=vmem, size = 0x12000, scoped, tag = 'internal scratch']
  #allocation2 [shape = 'f32[1,1]{1,0:T(1,128)}', space=vmem, size = 0x200, scoped, tag = 'scratch operand']
  #allocation3 [shape = 'f32[1,1]{1,0:T(1,128)}', space=vmem, size = 0x200, scoped, tag = 'scratch operand']
  #allocation4 [shape = 'f32[1,1]{1,0:T(1,128)}', space=vmem, size = 0x200, scoped, tag = 'scratch operand']
  #allocation5 [shape = 'f32[1,1]{1,0:T(1,128)}', space=vmem, size = 0x200, scoped, tag = 'scratch operand']
  %s0 = inlined_call_operand.vmem [shape: f32[8,16], index: 0, kind: input, shape index: {}]
  %s1 = inlined_call_operand.vmem [shape: s32[8,1], index: 1, kind: input, shape index: {}]
  %s2 = inlined_call_operand.hbm [shape: f32[8,128], index: 2, kind: output, shape index: {}]
  %s3 = sld [smem:[#allocation0]]
  $region26: #{tpu_custom_call.1} parent=0
    _
  %s5 = ssub.s32 1, %s3
  %s6 = scalar_select 0, %s5, %s3
  $region1: #{tpu_custom_call.1} parent=0
    #allocation6 [shape = 'u8[4096]{0}', space=vmem, size = 0x1000, scoped, tag = 'output window, operand 0, single buffered']
    #allocation7 [shape = 's32[1]{0}', space=sflag, size = 0x4, scoped, tag = 'scoped memory for tpu_custom_call.1']
    %7 = vsyncpa [#allocation7], 0
    // Predicated region
    $region2: #{tpu_custom_call.1} parent=1 // pred_check
      _
    $region3: #{tpu_custom_call.1} parent=1 // pred_check_branch
      %9 = sbr.rel (0) target = $region5
    $region4: #{tpu_custom_call.1} parent=1 // pred_region
      %s10 = sadd.s32 0, 0
      %p11 = scmp.lt.s32.totalorder %s10, 0
      %s12 = scalar_select %p11, %s10, 0
      %p13 = scmp.lt.s32.totalorder %s12, 0
      %s14 = scalar_select %p13, %s12, 0
      %s15 = smul.addr %s14, 8
      %s16 = scalar_lea.vmem %s0, %s15
      %s17 = sadd.s32 0, 0
      %p18 = scmp.lt.s32.totalorder %s17, 0
      %s19 = scalar_select %p18, %s17, 0
    $region5: #{tpu_custom_call.1} parent=1 // pred_fallthru
      _
    // Predicated region
    $region6: #{tpu_custom_call.1} parent=1 // pred_check
      _
    $region7: #{tpu_custom_call.1} parent=1 // pred_check_branch
      %21 = sbr.rel (0) target = $region9
    $region8: #{tpu_custom_call.1} parent=1 // pred_region
      _
    $region9: #{tpu_custom_call.1} parent=1 // pred_fallthru
      _
    %s22 = sadd.s32 0, 0
    %p23 = scmp.lt.s32.totalorder %s22, 0
    %s24 = scalar_select %p23, %s22, 0
    %p25 = scmp.lt.s32.totalorder %s24, 0
    %s26 = scalar_select %p25, %s24, 0
    %s27 = smul.addr %s26, 8
    %s28 = scalar_lea.vmem %s0, %s27
    %s29 = sadd.s32 0, 0
    %p30 = scmp.lt.s32.totalorder %s29, 0
    %s31 = scalar_select %p30, %s29, 0
    %p32 = scmp.lt.s32.totalorder %s31, 0
    %s33 = scalar_select %p32, %s31, 0
    %s34 = smul.addr %s33, 8
    %s35 = scalar_lea.vmem %s0, %s34
    %s36 = sadd.s32 0, 0
    %p37 = scmp.lt.s32.totalorder %s36, 0
    %s38 = scalar_select %p37, %s36, 0
    %p39 = scmp.eq.s32.totalorder 0, 0
    // Predicated region
    $region10: #{tpu_custom_call.1} parent=1 // pred_check
      %p40 = pneg %p39
    $region11: #{tpu_custom_call.1} parent=1 // pred_check_branch
      %42 = sbr.rel (%p40) target = $region13
    $region12: #{tpu_custom_call.1} parent=1 // pred_region
      %vm43 = vcmask 0
      %44 = vst.msk [vmem:[#allocation2] sm:$0x1] %vm43, 0.0
      %45 = vst.msk [vmem:[#allocation4] sm:$0x1] %vm43, 0.0
      %46 = vst.msk [vmem:[#allocation5] sm:$0x1] %vm43, 0.0
      %47 = vst.msk [vmem:[#allocation3] sm:$0x1] %vm43, -1e+30
    $region13: #{tpu_custom_call.1} parent=1 // pred_fallthru
      _
    %v48 = vld [vmem:[%s35] sm:$0xff]
    %s49 = sadd.s32 0, 0
    %s50 = smul.u32 %s49, 8
    %v51 = vlaneseq
    %v52 = vshrl.u32 %v51, 7
    %v53 = vstv %s50
    %v54 = vadd.s32 %v53, %v52
    %vm55 = vcmp.lt.s32.totalorder %v54, 8
    %s56 = scalar_lea.vmem %s1, %s50
    %v57 = vld [vmem:[%s56] sm:$0xff]
    %v58 = vlaneseq
    %v59 = vand.u32 %v58, 127
    %60 = vset.pattern.permute.xlu0 0
    %61 = vperm.xlu0 %60, %v57
    %v62 = vpop.permute.xlu0 %61
    %vm63 = vcmp.eq.s32.totalorder %v59, %v62
    %vm64 = vcmask 130048
    %v65 = vsel %vm64, %v48, -inf
    %66 = vmax.xlane.f32.xlu0 %v65
    %v67 = vpop.xlane.xlu0 %66
    %v68 = vsub.f32 %v48, %v67
    %v69 = vmul.f32 %v68, 1.442695
    %v70 = vpow.pop %v69
    %v71 = vsel %vm64, %v70, 0.0
    %72 = vadd.xlane.f32.xlu0 %v71
    %v73 = vpop.xlane.xlu0 %72
    %v74 = vsel %vm63, %v48, 0.0
    %v75 = vsel %vm64, %v74, 0.0
    %76 = vadd.xlane.f32.xlu0 %v75
    %v77 = vpop.xlane.xlu0 %76
    %v78 = vlog2.pop %v73
    %v79 = vmul.f32 %v78, 0.6931472
    %v80 = vadd.f32 %v79, %v67
    %v81 = vsub.f32 %v80, %v77
    %v82 = vsel %vm55, %v81, 0.0
    %v83 = vrot.slane %v82, 4
    %v84 = vadd.f32 %v82, %v83
    %v85 = vrot.slane %v84, 2
    %v86 = vadd.f32 %v84, %v85
    %v87 = vrot.slane %v86, 1
    %v88 = vadd.f32 %v86, %v87
    %v89 = vsel %vm63, -1e+30, %v48
    %v90 = vsel %vm64, %v89, -inf
    %91 = vmax.xlane.f32.xlu0 %v90
    %v92 = vpop.xlane.xlu0 %91
    %vm93 = vcmp.eq.f32.partialorder %v89, %v92
    %v94 = vsel %vm93, 1, 0
    %v95 = vcvt.s32.f32 %v94
    %v96 = vsel %vm64, %v95, 0.0
    %97 = vadd.xlane.f32.xlu0 %v96
    %v98 = vpop.xlane.xlu0 %97
    %v99 = vmin.f32 %v98, 4.0
    %v100 = vmul.f32 %v99, %v92
    %v101 = vadd.f32 %v100, 0.0
    %v102 = vsub.f32 4.0, %v99
    %v103 = vsel %vm93, -1e+30, %v89
    %v104 = vsel %vm64, %v103, -inf
    %105 = vmax.xlane.f32.xlu0 %v104
    %v106 = vpop.xlane.xlu0 %105
    %vm107 = vcmp.eq.f32.partialorder %v103, %v106
    %v108 = vsel %vm107, 1, 0
    %v109 = vcvt.s32.f32 %v108
    %v110 = vsel %vm64, %v109, 0.0
    %111 = vadd.xlane.f32.xlu0 %v110
    %v112 = vpop.xlane.xlu0 %111
    %v113 = vmin.f32 %v112, %v102
    %v114 = vmul.f32 %v113, %v106
    %v115 = vadd.f32 %v101, %v114
    %v116 = vsub.f32 %v102, %v113
    %v117 = vsel %vm107, -1e+30, %v103
    %v118 = vsel %vm64, %v117, -inf
    %119 = vmax.xlane.f32.xlu0 %v118
    %v120 = vpop.xlane.xlu0 %119
    %vm121 = vcmp.eq.f32.partialorder %v117, %v120
    %v122 = vsel %vm121, 1, 0
    %v123 = vcvt.s32.f32 %v122
    %v124 = vsel %vm64, %v123, 0.0
    %125 = vadd.xlane.f32.xlu0 %v124
    %v126 = vpop.xlane.xlu0 %125
    %v127 = vmin.f32 %v126, %v116
    %v128 = vmul.f32 %v127, %v120
    %v129 = vadd.f32 %v115, %v128
    %v130 = vsub.f32 %v116, %v127
    %v131 = vsel %vm121, -1e+30, %v117
    %v132 = vsel %vm64, %v131, -inf
    %133 = vmax.xlane.f32.xlu0 %v132
    %v134 = vpop.xlane.xlu0 %133
    %vm135 = vcmp.eq.f32.partialorder %v131, %v134
    %v136 = vsel %vm135, 1, 0
    %v137 = vcvt.s32.f32 %v136
    %v138 = vsel %vm64, %v137, 0.0
    %139 = vadd.xlane.f32.xlu0 %v138
    %v140 = vpop.xlane.xlu0 %139
    %v141 = vmin.f32 %v140, %v130
    %v142 = vmul.f32 %v141, %v134
    %v143 = vadd.f32 %v129, %v142
    %v144 = vsub.f32 %v143, %v92
    %v145 = vmul.f32 %v144, 0.33333334
    %v146 = vsel %vm55, %v145, -1e+30
    %v147 = vld [vmem:[#allocation3] sm:$0x1]
    %v148 = vrot.slane %v146, 4
    %v149 = vmax.f32 %v146, %v148
    %v150 = vrot.slane %v149, 2
    %v151 = vmax.f32 %v149, %v150
    %v152 = vrot.slane %v151, 1
    %v153 = vmax.f32 %v151, %v152
    %v154 = vmax.f32 %v147, %v153
    %v155 = vld [vmem:[#allocation4] sm:$0x1]
    %v156 = vsub.f32 %v147, %v154
    %v157 = vmul.f32 %v156, 1.442695
    %v158 = vpow.pop %v157
    %v159 = vmul.f32 %v155, %v158
    %v161 = vlaneseq
    %v162 = vshrl.u32 %v161, 7
    %v163 = vsub.s32 0, %v162
    %v164 = vrot.slane %v154, %v163
    %v166 = vsub.f32 %v146, %v164
    %v167 = vmul.f32 %v166, 1.442695
    %v168 = vpow.pop %v167
    %vm169 = vcmask 7168
    %v170 = vsel %vm169, %v168, 0.0
    %v171 = vrot.slane %v170, 4
    %v172 = vadd.f32 %v170, %v171
    %v173 = vrot.slane %v172, 2
    %v174 = vadd.f32 %v172, %v173
    %v175 = vrot.slane %v174, 1
    %v176 = vadd.f32 %v174, %v175
    %v177 = vadd.f32 %v159, %v176
    %vm178 = vcmask 0
    %179 = vst.msk [vmem:[#allocation4] sm:$0x1] %vm178, %v177
    %180 = vst.msk [vmem:[#allocation3] sm:$0x1] %vm178, %v154
    %v181 = vld [vmem:[#allocation5] sm:$0x1]
    %v182 = vsel %vm55, %v145, 0.0
    %v183 = vrot.slane %v182, 4
    %v184 = vadd.f32 %v182, %v183
    %v185 = vrot.slane %v184, 2
    %v186 = vadd.f32 %v184, %v185
    %v187 = vrot.slane %v186, 1
    %v188 = vadd.f32 %v186, %v187
    %v189 = vadd.f32 %v181, %v188
    %190 = vst.msk [vmem:[#allocation5] sm:$0x1] %vm178, %v189
    %v191 = vld [vmem:[#allocation2] sm:$0x1]
    %v192 = vadd.f32 %v191, %v88
    %193 = vst.msk [vmem:[#allocation2] sm:$0x1] %vm178, %v192
    // Predicated region
    $region14: #{tpu_custom_call.1} parent=1 // pred_check
      %p194 = pneg %p39
    $region15: #{tpu_custom_call.1} parent=1 // pred_check_branch
      %196 = sbr.rel (%p194) target = $region17
    $region16: #{tpu_custom_call.1} parent=1 // pred_region
      %vm197 = vcmp.eq.s32.totalorder %v52, 0
      %vm198 = vcmp.eq.s32.totalorder %v59, 0
      %vm199 = vmand %vm197, %vm198
      %v200 = vld [vmem:[#allocation2] sm:$0x1]
      %v202 = vlaneseq
      %v203 = vshrl.u32 %v202, 7
      %v204 = vsub.s32 0, %v203
      %v205 = vrot.slane %v200, %v204
      %206 = vset.pattern.permute.xlu0 0
      %207 = vperm.xlu0 %206, %v205
      %v208 = vpop.permute.xlu0 %207
      %v210 = vsel %vm199, %v208, 0.0
      %vm211 = vcmp.eq.s32.totalorder %v59, 1
      %vm212 = vmand %vm197, %vm211
      %v213 = vld [vmem:[#allocation3] sm:$0x1]
      %v215 = vlaneseq
      %v216 = vshrl.u32 %v215, 7
      %v217 = vsub.s32 0, %v216
      %v218 = vrot.slane %v213, %v217
      %219 = vset.pattern.permute.xlu0 0
      %220 = vperm.xlu0 %219, %v218
      %v221 = vpop.permute.xlu0 %220
      %v223 = vsel %vm212, %v221, %v210
      %vm224 = vcmp.eq.s32.totalorder %v59, 2
      %vm225 = vmand %vm197, %vm224
      %v226 = vld [vmem:[#allocation4] sm:$0x1]
      %v228 = vlaneseq
      %v229 = vshrl.u32 %v228, 7
      %v230 = vsub.s32 0, %v229
      %v231 = vrot.slane %v226, %v230
      %232 = vset.pattern.permute.xlu0 0
      %233 = vperm.xlu0 %232, %v231
      %v234 = vpop.permute.xlu0 %233
      %v236 = vsel %vm225, %v234, %v223
      %vm237 = vcmp.eq.s32.totalorder %v59, 3
      %vm238 = vmand %vm197, %vm237
      %v239 = vld [vmem:[#allocation5] sm:$0x1]
      %v241 = vlaneseq
      %v242 = vshrl.u32 %v241, 7
      %v243 = vsub.s32 0, %v242
      %v244 = vrot.slane %v239, %v243
      %245 = vset.pattern.permute.xlu0 0
      %246 = vperm.xlu0 %245, %v244
      %v247 = vpop.permute.xlu0 %246
      %v249 = vsel %vm238, %v247, %v236
      %250 = vst [vmem:[#allocation6] sm:$0xff] %v249
    $region17: #{tpu_custom_call.1} parent=1 // pred_fallthru
      _
    // Predicated region
    $region18: #{tpu_custom_call.1} parent=1 // pred_check
      _
    $region19: #{tpu_custom_call.1} parent=1 // pred_check_branch
      %252 = sbr.rel (0) target = $region21
    $region20: #{tpu_custom_call.1} parent=1 // pred_region
      %s254 = ssub.s32 128, 128
      %255 = vsyncadd [#allocation7], %s254
      %s257 = sshll.u32 [#allocation6], 4
      %s258 = int_to_ptr.vmem [resolvable:$true] %s257
      %260 = dma.vmem_to_hbm [thread:$0]  %s258, 128, %s2, [#allocation7]
    $region21: #{tpu_custom_call.1} parent=1 // pred_fallthru
      _
    // Predicated region
    $region22: #{tpu_custom_call.1} parent=1 // pred_check
      _
    $region23: #{tpu_custom_call.1} parent=1 // pred_check_branch
      %262 = sbr.rel (0) target = $region25
    $region24: #{tpu_custom_call.1} parent=1 // pred_region
      %263 = dma.done [#allocation7], 128
    $region25: #{tpu_custom_call.1} parent=1 // pred_fallthru
      _
    %264 = vsyncpa [#allocation7], 1

</llo_original>
